<compile_context>
chip_gen: v7x
topology: tpu7x:2x2x1
jax: 0.10.0
libtpu: 0.0.40
codegen_flags: <defaults>
</compile_context>

<pallas_src>
import functools
import math

import jax
import jax.numpy as jnp
from jax.experimental import pallas as pl
from jax.experimental.pallas import tpu as pltpu


M_PAD = 8      # sublane padding for the single noise row
LANE = 128     # lane width


def _round_up(n: int, m: int) -> int:
    return ((n + m - 1) // m) * m


def _pick_tile_n(n_pad: int, d_last_pad: int) -> int:
    """Column-tile width for the streamed output layer.

    Budget-derived (double-buffered bf16 weight tile + bias + f32 output tile),
    conservative 12 MiB so it fits v5e's 16 MiB scoped-VMEM default and leaves
    headroom on v7x's 64 MiB physical VMEM; among feasible multiples of 128 we
    pick the one minimizing round-up padding of n_pad (tie-break: larger tile).
    """
    bytes_per_col = 2 * d_last_pad * 2 + 2 * 4 + 2 * M_PAD * 4
    budget = 12 * 1024 * 1024
    tile_max = (budget // bytes_per_col) // LANE * LANE
    tile_max = max(LANE, min(tile_max, 8192))
    if tile_max >= n_pad:
        return n_pad                       # single tile, zero column padding
    best, best_waste = LANE, None
    for cand in range(LANE, tile_max + 1, LANE):
        waste = (-n_pad) % cand
        if best_waste is None or waste < best_waste or (waste == best_waste and cand > best):
            best, best_waste = cand, waste
    return best


# --------------------- Stage 1: hidden Linear/ReLU chain --------------------
# Tiny; runs once (no grid).  Emits the bf16 activation row consumed by the
# streamed output-layer call.

def _make_hidden_kernel(num_hidden: int):
    def kernel(x_ref, *refs):
        h_ref = refs[-1]
        h = x_ref[...]                                    # (M_PAD, d0_pad) f32
        for i in range(num_hidden):
            w = refs[2 * i][...]                          # (Din_pad, Dout_pad) bf16
            b = refs[2 * i + 1][...]                      # (1, Dout_pad)       f32
            h = jnp.dot(h.astype(jnp.bfloat16), w,
                        preferred_element_type=jnp.float32) + b
            h = jnp.maximum(h, 0.0)                       # ReLU on hidden layers only
        h_ref[...] = h.astype(jnp.bfloat16)
    return kernel


# --------------------- Stage 2: streamed output layer -----------------------
# 1-D grid over lane-dense column tiles of the (potentially huge) last-layer
# weight; body is a single MXU matmul so the HBM weight DMA dominates.

def _out_layer_kernel(h_ref, w_ref, b_ref, o_ref):
    o_ref[...] = jnp.dot(h_ref[...], w_ref[...],
                         preferred_element_type=jnp.float32) + b_ref[...]


def _noise_forward(x, hidden_ws, hidden_bs, out_w, out_b, *,
                   dim_start, d0_pad, d_last_pad, tile_n, n_tiles):
    num_hidden = len(hidden_ws)

    # Pad the randn vector into a lane/sublane-dense (8, d0_pad) slab.
    x_pad = jnp.zeros((M_PAD, d0_pad), jnp.float32).at[0, :dim_start].set(x)

    hidden_ops = []
    for w, b in zip(hidden_ws, hidden_bs):
        hidden_ops.append(w)
        hidden_ops.append(b)

    h = pl.pallas_call(
        _make_hidden_kernel(num_hidden),
        out_shape=jax.ShapeDtypeStruct((M_PAD, d_last_pad), jnp.bfloat16),
    )(x_pad, *hidden_ops)

    n_cols_pad = n_tiles * tile_n
    cost = pl.CostEstimate(
        flops=2 * M_PAD * d_last_pad * n_cols_pad,
        transcendentals=0,
        bytes_accessed=(d_last_pad * n_cols_pad * 2     # bf16 weight stream
                        + n_cols_pad * 4                # bias
                        + M_PAD * n_cols_pad * 4        # f32 output
                        + M_PAD * d_last_pad * 2),      # resident h
    )

    out = pl.pallas_call(
        _out_layer_kernel,
        grid=(n_tiles,),
        in_specs=[
            # h: constant block index -> stays resident in VMEM across the grid.
            pl.BlockSpec((M_PAD, d_last_pad), lambda j: (0, 0)),
            # Last-layer weight/bias: one lane-dense column tile per grid step.
            pl.BlockSpec((d_last_pad, tile_n), lambda j: (0, j)),
            pl.BlockSpec((1, tile_n), lambda j: (0, j)),
        ],
        out_specs=pl.BlockSpec((M_PAD, tile_n), lambda j: (0, j)),
        out_shape=jax.ShapeDtypeStruct((M_PAD, n_cols_pad), jnp.float32),
        compiler_params=pltpu.CompilerParams(
            # No cross-step state and no constant-index output any more, so the
            # column axis can shard across v7x's two TensorCores.
            dimension_semantics=("parallel",),
            vmem_limit_bytes=32 * 1024 * 1024,
        ),
        cost_estimate=cost,
    )(h, out_w, out_b)
    return out


class NoiseGeneratorJAX:
    """JAX/Pallas port of NoiseGenerator.

    Parameters use PyTorch-style uniform(-1/sqrt(fan_in), 1/sqrt(fan_in)) init,
    stored zero-padded to lane multiples; weights bf16, biases f32.
    """

    def __init__(self, dim_out, dim_hidden=(1000,), dim_start=100, param_seed=0):
        self.dim = tuple(dim_out)
        self.start_dims = int(dim_start)
        self.n_out = math.prod(self.dim)

        dims = [self.start_dims] + list(dim_hidden) + [self.n_out]
        dims_pad = [_round_up(d, LANE) for d in dims]

        self.d0_pad = dims_pad[0]
        self.d_last_pad = dims_pad[-2]
        n_pad = dims_pad[-1]
        self.tile_n = _pick_tile_n(n_pad, self.d_last_pad)
        self.n_tiles = (n_pad + self.tile_n - 1) // self.tile_n
        n_cols_pad = self.n_tiles * self.tile_n

        key = jax.random.PRNGKey(param_seed)
        self.hidden_ws, self.hidden_bs = [], []
        for i in range(len(dims) - 2):
            fan_in, fan_out = dims[i], dims[i + 1]
            in_pad, out_pad = dims_pad[i], dims_pad[i + 1]
            key, kw, kb = jax.random.split(key, 3)
            bound = 1.0 / math.sqrt(fan_in)
            w = jax.random.uniform(kw, (fan_in, fan_out), jnp.float32, -bound, bound)
            b = jax.random.uniform(kb, (1, fan_out), jnp.float32, -bound, bound)
            w_pad = jnp.zeros((in_pad, out_pad), jnp.float32).at[:fan_in, :fan_out].set(w)
            b_pad = jnp.zeros((1, out_pad), jnp.float32).at[:, :fan_out].set(b)
            self.hidden_ws.append(w_pad.astype(jnp.bfloat16))
            self.hidden_bs.append(b_pad)

        # Output layer (columns padded only as far as the chosen tile requires).
        fan_in, fan_out = dims[-2], dims[-1]
        key, kw, kb = jax.random.split(key, 3)
        bound = 1.0 / math.sqrt(fan_in)
        w = jax.random.uniform(kw, (fan_in, fan_out), jnp.float32, -bound, bound)
        b = jax.random.uniform(kb, (1, fan_out), jnp.float32, -bound, bound)
        w_pad = jnp.zeros((self.d_last_pad, n_cols_pad), jnp.float32)
        self.out_w = w_pad.at[:fan_in, :fan_out].set(w).astype(jnp.bfloat16)
        self.out_b = jnp.zeros((1, n_cols_pad), jnp.float32).at[:, :fan_out].set(b)

        self._forward = jax.jit(functools.partial(
            _noise_forward,
            dim_start=self.start_dims, d0_pad=self.d0_pad,
            d_last_pad=self.d_last_pad, tile_n=self.tile_n,
            n_tiles=self.n_tiles))

    def sample(self, key):
        """Returns (noise reshaped to dim_out, the randn input used)."""
        x = jax.random.normal(key, (self.start_dims,), jnp.float32)
        out_pad = self._forward(x, self.hidden_ws, self.hidden_bs,
                                self.out_w, self.out_b)
        noise = out_pad[0, : self.n_out].reshape(self.dim)
        return noise, x

    def __call__(self, key=None):
        if key is None:
            key = jax.random.PRNGKey(0)
        return self.sample(key)[0]


if __name__ == "__main__":
    # Small shapes consistent with the module:
    #   dim_start=32, dim_hidden=[64], dim_out=[2, 4, 16]  (prod = 128)
    gen = NoiseGeneratorJAX(dim_out=[2, 4, 16], dim_hidden=[64],
                            dim_start=32, param_seed=0)

    sample_key = jax.random.PRNGKey(0)
    noise, x = gen.sample(sample_key)
    noise = jax.block_until_ready(noise)

    assert noise.shape == (2, 4, 16)
    assert noise.dtype == jnp.float32

    # Pure-JAX reference of the same Linear/ReLU chain (same bf16 casts as the
    # kernel; zero-padded params make padding exact).
    h = jnp.zeros((1, gen.d0_pad), jnp.float32).at[0, : gen.start_dims].set(x)
    for w, b in zip(gen.hidden_ws, gen.hidden_bs):
        h = jnp.dot(h.astype(jnp.bfloat16), w,
                    preferred_element_type=jnp.float32) + b
        h = jnp.maximum(h, 0.0)
    ref = jnp.dot(h.astype(jnp.bfloat16), gen.out_w,
                  preferred_element_type=jnp.float32) + gen.out_b
    ref = ref[0, : gen.n_out].reshape(gen.dim)

    assert bool(jnp.all(jnp.isfinite(noise)))
    assert jnp.allclose(noise, ref, atol=2e-3, rtol=2e-3)

    print("KERNEL_OK")
</pallas_src>

<mosaic_0001>
module attributes {stable_mosaic.version = 11 : i64} {
  func.func @kernel(%arg0: memref<8x128xf32, #tpu.memory_space<vmem>>, %arg1: memref<128x128xbf16, #tpu.memory_space<vmem>>, %arg2: memref<1x128xf32, #tpu.memory_space<vmem>>, %arg3: memref<8x128xbf16, #tpu.memory_space<vmem>>) attributes {dimension_semantics = [], scalar_prefetch = 0 : i64, scratch_operands = 0 : i64, tpu.core_type = #tpu.core_type<tc>} {
    %c0 = arith.constant 0 : index
    %c0_0 = arith.constant 0 : index
    %0 = vector.load %arg0[%c0, %c0_0] : memref<8x128xf32, #tpu.memory_space<vmem>>, vector<8x128xf32>
    %c0_1 = arith.constant 0 : index
    %c0_2 = arith.constant 0 : index
    %1 = vector.load %arg1[%c0_1, %c0_2] : memref<128x128xbf16, #tpu.memory_space<vmem>>, vector<128x128xbf16>
    %c0_3 = arith.constant 0 : index
    %c0_4 = arith.constant 0 : index
    %2 = vector.load %arg2[%c0_3, %c0_4] : memref<1x128xf32, #tpu.memory_space<vmem>>, vector<1x128xf32>
    %3 = arith.truncf %0 : vector<8x128xf32> to vector<8x128xbf16>
    %cst = arith.constant dense<0.000000e+00> : vector<8x128xf32>
    %4 = tpu.matmul %3, %1, %cst {dimension_numbers = #tpu.dot_dimension_numbers<[1], [0], [0], [1], [0, 0, 1, 1], [], []>} : vector<8x128xbf16>, vector<128x128xbf16>, vector<8x128xf32> -> vector<8x128xf32>
    %5 = vector.broadcast %2 : vector<1x128xf32> to vector<8x128xf32>
    %6 = arith.addf %4, %5 : vector<8x128xf32>
    %cst_5 = arith.constant 0.000000e+00 : f32
    %7 = vector.broadcast %cst_5 : f32 to vector<8x128xf32>
    %8 = arith.maximumf %6, %7 : vector<8x128xf32>
    %9 = arith.truncf %8 : vector<8x128xf32> to vector<8x128xbf16>
    %c0_6 = arith.constant 0 : index
    %c0_7 = arith.constant 0 : index
    %10 = vector.load %arg3[%c0_6, %c0_7] : memref<8x128xbf16, #tpu.memory_space<vmem>>, vector<8x128xbf16>
    tpu.vector_store %arg3[%c0_6, %c0_7], %9 {strides = array<i32>} : memref<8x128xbf16, #tpu.memory_space<vmem>>, vector<8x128xbf16>,
    return
  }
}

module attributes {stable_mosaic.version = 11 : i64} {
  func.func @_out_layer_kernel(%arg0: i32, %arg1: memref<8x128xbf16, #tpu.memory_space<vmem>>, %arg2: memref<128x128xbf16, #tpu.memory_space<vmem>>, %arg3: memref<1x128xf32, #tpu.memory_space<vmem>>, %arg4: memref<8x128xf32, #tpu.memory_space<vmem>>) attributes {dimension_semantics = [#tpu.dimension_semantics<parallel>], iteration_bounds = array<i64: 1>, scalar_prefetch = 0 : i64, scratch_operands = 0 : i64, tpu.core_type = #tpu.core_type<tc>, window_params = [{pipeline_mode = #tpu.pipeline_mode<synchronous>, transform_indices = @transform_0, window_bounds = array<i64: 8, 128>}, {transform_indices = @transform_1, window_bounds = array<i64: 128, 128>}, {transform_indices = @transform_2, window_bounds = array<i64: 1, 128>}, {transform_indices = @transform_3, window_bounds = array<i64: 8, 128>}]} {
    %c0 = arith.constant 0 : index
    %c0_0 = arith.constant 0 : index
    %0 = vector.load %arg1[%c0, %c0_0] : memref<8x128xbf16, #tpu.memory_space<vmem>>, vector<8x128xbf16>
    %c0_1 = arith.constant 0 : index
    %c0_2 = arith.constant 0 : index
    %1 = vector.load %arg2[%c0_1, %c0_2] : memref<128x128xbf16, #tpu.memory_space<vmem>>, vector<128x128xbf16>
    %cst = arith.constant dense<0.000000e+00> : vector<8x128xf32>
    %2 = tpu.matmul %0, %1, %cst {dimension_numbers = #tpu.dot_dimension_numbers<[1], [0], [0], [1], [0, 0, 1, 1], [], []>} : vector<8x128xbf16>, vector<128x128xbf16>, vector<8x128xf32> -> vector<8x128xf32>
    %c0_3 = arith.constant 0 : index
    %c0_4 = arith.constant 0 : index
    %3 = vector.load %arg3[%c0_3, %c0_4] : memref<1x128xf32, #tpu.memory_space<vmem>>, vector<1x128xf32>
    %4 = vector.broadcast %3 : vector<1x128xf32> to vector<8x128xf32>
    %5 = arith.addf %2, %4 : vector<8x128xf32>
    %c0_5 = arith.constant 0 : index
    %c0_6 = arith.constant 0 : index
    %6 = vector.load %arg4[%c0_5, %c0_6] : memref<8x128xf32, #tpu.memory_space<vmem>>, vector<8x128xf32>
    tpu.vector_store %arg4[%c0_5, %c0_6], %5 {strides = array<i32>} : memref<8x128xf32, #tpu.memory_space<vmem>>, vector<8x128xf32>,
    return
  }
  func.func @transform_0(%arg0: i32) -> (i32, i32) {
    %c0_i32 = arith.constant 0 : i32
    %c0_i32_0 = arith.constant 0 : i32
    %c0_i32_1 = arith.constant 0 : i32
    return %c0_i32, %c0_i32_0 : i32, i32
  }
  func.func @transform_1(%arg0: i32) -> (i32, i32) {
    %c0_i32 = arith.constant 0 : i32
    %c0_i32_0 = arith.constant 0 : i32
    return %c0_i32, %arg0 : i32, i32
  }
  func.func @transform_2(%arg0: i32) -> (i32, i32) {
    %c0_i32 = arith.constant 0 : i32
    %c0_i32_0 = arith.constant 0 : i32
    return %c0_i32, %arg0 : i32, i32
  }
  func.func @transform_3(%arg0: i32) -> (i32, i32) {
    %c0_i32 = arith.constant 0 : i32
    %c0_i32_0 = arith.constant 0 : i32
    return %c0_i32, %arg0 : i32, i32
  }
}

</mosaic_0001>

<llo_original>
// kernel: _noise_forward.2
$region0: #{_noise_forward.2}
  #allocation0 [shape = 'u32[]', space=smem, size = 0x4, offset = 0x4, fixed_abs, tag = 'smem constant byte address 0x4 - core index']
  #allocation1 [shape = 'u32[144,128]{1,0:T(1,128)}', space=vmem, size = 0x12000, scoped, tag = 'internal scratch']
  %s0 = inlined_call_operand.vmem [shape: f32[8,128], index: 0, kind: input, shape index: {}]
  %s1 = inlined_call_operand.hbm [shape: bf16[128,128], index: 1, kind: input, shape index: {}]
  %s2 = inlined_call_operand.hbm [shape: f32[1,128], index: 2, kind: input, shape index: {}]
  %s3 = inlined_call_operand.vmem [shape: bf16[8,128], index: 3, kind: output, shape index: {}]
  %s4 = sld [smem:[#allocation0]]
  $region30: #{_noise_forward.2} parent=0
    _
  %s6 = ssub.s32 1, %s4
  %s7 = scalar_select 0, %s6, %s4
  $region1: #{_noise_forward.2} parent=0
    #allocation2 [shape = 'u8[32768]{0}', space=vmem, size = 0x8000, scoped, tag = 'input window, operand 1, single buffered']
    #allocation3 [shape = 's32[1]{0}', space=sflag, size = 0x4, scoped, tag = 'scoped memory for _noise_forward.2']
    #allocation4 [shape = 'u8[512]{0}', space=vmem, size = 0x400, scoped, tag = 'input window, operand 2, single buffered']
    #allocation5 [shape = 's32[1]{0}', space=sflag, size = 0x4, scoped, tag = 'scoped memory for _noise_forward.2']
    %8 = vsyncpa [#allocation3], 0
    %9 = vsyncpa [#allocation5], 0
    // Predicated region
    $region2: #{_noise_forward.2} parent=1 // pred_check
      _
    $region3: #{_noise_forward.2} parent=1 // pred_check_branch
      %11 = sbr.rel (0) target = $region5
    $region4: #{_noise_forward.2} parent=1 // pred_region
      _
    $region5: #{_noise_forward.2} parent=1 // pred_fallthru
      _
    // Predicated region
    $region6: #{_noise_forward.2} parent=1 // pred_check
      _
    $region7: #{_noise_forward.2} parent=1 // pred_check_branch
      %13 = sbr.rel (0) target = $region9
    $region8: #{_noise_forward.2} parent=1 // pred_region
      %s15 = ssub.s32 1024, 1024
      %16 = vsyncadd [#allocation3], %s15
      %s17 = sshll.u32 [#allocation2], 4
      %s18 = int_to_ptr.vmem [resolvable:$true] %s17
      %23 = dma.hbm_to_vmem [thread:$0]  %s1, 1024, %s18, [#allocation3], 64, 64, 4
    $region9: #{_noise_forward.2} parent=1 // pred_fallthru
      _
    // Predicated region
    $region10: #{_noise_forward.2} parent=1 // pred_check
      _
    $region11: #{_noise_forward.2} parent=1 // pred_check_branch
      %25 = sbr.rel (0) target = $region13
    $region12: #{_noise_forward.2} parent=1 // pred_region
      %s27 = ssub.s32 16, 16
      %28 = vsyncadd [#allocation5], %s27
      %s30 = sshll.u32 [#allocation4], 4
      %s31 = int_to_ptr.vmem [resolvable:$true] %s30
      %33 = dma.hbm_to_vmem [thread:$0]  %s2, 16, %s31, [#allocation5]
    $region13: #{_noise_forward.2} parent=1 // pred_fallthru
      _
    // Predicated region
    $region14: #{_noise_forward.2} parent=1 // pred_check
      _
    $region15: #{_noise_forward.2} parent=1 // pred_check_branch
      %35 = sbr.rel (0) target = $region17
    $region16: #{_noise_forward.2} parent=1 // pred_region
      %36 = dma.done [#allocation3], 1024
    $region17: #{_noise_forward.2} parent=1 // pred_fallthru
      _
    // Predicated region
    $region18: #{_noise_forward.2} parent=1 // pred_check
      _
    $region19: #{_noise_forward.2} parent=1 // pred_check_branch
      %38 = sbr.rel (0) target = $region21
    $region20: #{_noise_forward.2} parent=1 // pred_region
      %39 = dma.done [#allocation5], 16
    $region21: #{_noise_forward.2} parent=1 // pred_fallthru
      _
    %v41 = vld [vmem:[%s0] sm:$0xff]
    %v42 = vld [vmem:[#allocation2] sm:$0xf]
    %v43 = vld [vmem:[#allocation2 + $0x4] sm:$0xf]
    %v44 = vld [vmem:[#allocation2 + $0x8] sm:$0xf]
    %v45 = vld [vmem:[#allocation2 + $0xc] sm:$0xf]
    %v46 = vld [vmem:[#allocation2 + $0x10] sm:$0xf]
    %v47 = vld [vmem:[#allocation2 + $0x14] sm:$0xf]
    %v48 = vld [vmem:[#allocation2 + $0x18] sm:$0xf]
    %v49 = vld [vmem:[#allocation2 + $0x1c] sm:$0xf]
    %v50 = vld [vmem:[#allocation2 + $0x20] sm:$0xf]
    %v51 = vld [vmem:[#allocation2 + $0x24] sm:$0xf]
    %v52 = vld [vmem:[#allocation2 + $0x28] sm:$0xf]
    %v53 = vld [vmem:[#allocation2 + $0x2c] sm:$0xf]
    %v54 = vld [vmem:[#allocation2 + $0x30] sm:$0xf]
    %v55 = vld [vmem:[#allocation2 + $0x34] sm:$0xf]
    %v56 = vld [vmem:[#allocation2 + $0x38] sm:$0xf]
    %v57 = vld [vmem:[#allocation2 + $0x3c] sm:$0xf]
    %v58 = vld [vmem:[#allocation4] sm:$0x1]
    %v59 = vpack.c.bf16 %v41, %v41
    %v61 = vlaneseq
    %v62 = vshrl.u32 %v61, 7
    %v63 = vsub.s32 0, %v62
    %v64 = vrot.slane %v58, %v63
    %v82 = vunpack.c.l.b16 %v42
    %v83 = vunpack.c.l.b16 %v43
    %v84 = vunpack.c.l.b16 %v44
    %v85 = vunpack.c.l.b16 %v45
    %v86 = vunpack.c.l.b16 %v46
    %v87 = vunpack.c.l.b16 %v47
    %v88 = vunpack.c.l.b16 %v48
    %v89 = vunpack.c.l.b16 %v49
    %v90 = vunpack.c.l.b16 %v50
    %v91 = vunpack.c.l.b16 %v51
    %v92 = vunpack.c.l.b16 %v52
    %v93 = vunpack.c.l.b16 %v53
    %v94 = vunpack.c.l.b16 %v54
    %v95 = vunpack.c.l.b16 %v55
    %v96 = vunpack.c.l.b16 %v56
    %v97 = vunpack.c.l.b16 %v57
    %v98 = vpack.c.b16 %v83, %v82
    %v99 = vpack.c.b16 %v85, %v84
    %v100 = vpack.c.b16 %v87, %v86
    %v101 = vpack.c.b16 %v89, %v88
    %v102 = vpack.c.b16 %v91, %v90
    %v103 = vpack.c.b16 %v93, %v92
    %v104 = vpack.c.b16 %v95, %v94
    %v105 = vpack.c.b16 %v97, %v96
    %114 = vmatprep.subr.bf16.mxu0 0
    %115 = vmatpush1.bf16.msra.mxu0 %v98
    %116 = vmatprep.subr.bf16.mxu0 0
    %117 = vmatpush1.bf16.msra.mxu0 %v99
    %118 = vmatprep.subr.bf16.mxu0 0
    %119 = vmatpush1.bf16.msra.mxu0 %v100
    %120 = vmatprep.subr.bf16.mxu0 0
    %121 = vmatpush1.bf16.msra.mxu0 %v101
    %122 = vmatprep.subr.bf16.mxu0 0
    %123 = vmatpush1.bf16.msra.mxu0 %v102
    %124 = vmatprep.subr.bf16.mxu0 0
    %125 = vmatpush1.bf16.msra.mxu0 %v103
    %126 = vmatprep.subr.bf16.mxu0 0
    %127 = vmatpush1.bf16.msra.mxu0 %v104
    %128 = vmatprep.subr.bf16.mxu0 0
    %129 = vmatpush1.bf16.msra.mxu0 %v105
    %130 = vmatprep.subr.bf16.mxu0 0
    %131 = vmatpush1.bf16.msra.mxu0 0
    %132 = vmatprep.subr.bf16.mxu0 0
    %133 = vmatpush1.bf16.msra.mxu0 0
    %134 = vmatprep.subr.bf16.mxu0 0
    %135 = vmatpush1.bf16.msra.mxu0 0
    %136 = vmatprep.subr.bf16.mxu0 0
    %137 = vmatpush1.bf16.msra.mxu0 0
    %138 = vmatprep.subr.bf16.mxu0 0
    %139 = vmatpush1.bf16.msra.mxu0 0
    %140 = vmatprep.subr.bf16.mxu0 0
    %141 = vmatpush1.bf16.msra.mxu0 0
    %142 = vmatprep.subr.bf16.mxu0 0
    %143 = vmatpush1.bf16.msra.mxu0 0
    %144 = vmatprep.subr.bf16.mxu0 0
    %145 = vmatpush1.bf16.msra.mxu0 0
    %146 = vmatprep.mubr.bf16.mxu0 0
    %147 = vmatmul.mubr.bf16.gmra.mrb[0].mxu0 %v59
    %v148 = vpop.f32.mrb[0].mxu0
    %v149 = vadd.f32 %v64, %v148
    %v150 = vpop.f32.mrb[0].mxu0
    %v151 = vpop.f32.mrb[0].mxu0
    %v152 = vpop.f32.mrb[0].mxu0
    %153 = vdwg.mxu0
    %v154 = vmax.f32 %v149, 0.0
    %v155 = vpack.c.bf16 %v154, %v154
    %156 = vst [vmem:[%s3] sm:$0xf] %v155
    // Predicated region
    $region22: #{_noise_forward.2} parent=1 // pred_check
      _
    $region23: #{_noise_forward.2} parent=1 // pred_check_branch
      %158 = sbr.rel (0) target = $region25
    $region24: #{_noise_forward.2} parent=1 // pred_region
      _
    $region25: #{_noise_forward.2} parent=1 // pred_fallthru
      _
    // Predicated region
    $region26: #{_noise_forward.2} parent=1 // pred_check
      _
    $region27: #{_noise_forward.2} parent=1 // pred_check_branch
      %160 = sbr.rel (0) target = $region29
    $region28: #{_noise_forward.2} parent=1 // pred_region
      _
    $region29: #{_noise_forward.2} parent=1 // pred_fallthru
      _
    %161 = vsyncpa [#allocation3], 1
    %162 = vsyncpa [#allocation5], 1

// kernel: _noise_forward.3
$region0: #{_noise_forward.3}
  #allocation0 [shape = 'u32[]', space=smem, size = 0x4, offset = 0x4, fixed_abs, tag = 'smem constant byte address 0x4 - core index']
  #allocation1 [shape = 'u32[144,128]{1,0:T(1,128)}', space=vmem, size = 0x12000, scoped, tag = 'internal scratch']
  %s0 = inlined_call_operand.vmem [shape: bf16[8,128], index: 0, kind: input, shape index: {}]
  %s1 = inlined_call_operand.vmem [shape: bf16[128,128], index: 1, kind: input, shape index: {}]
  %s2 = inlined_call_operand.vmem [shape: f32[1,128], index: 2, kind: input, shape index: {}]
  %s3 = inlined_call_operand.hbm [shape: f32[8,128], index: 3, kind: output, shape index: {}]
  %s4 = sld [smem:[#allocation0]]
  $region22: #{_noise_forward.3} parent=0
    _
  %s6 = ssub.s32 1, %s4
  %s7 = scalar_select 0, %s6, %s4
  $region1: #{_noise_forward.3} parent=0
    #allocation2 [shape = 'u8[4096]{0}', space=vmem, size = 0x1000, scoped, tag = 'output window, operand 0, single buffered']
    #allocation3 [shape = 's32[1]{0}', space=sflag, size = 0x4, scoped, tag = 'scoped memory for _noise_forward.3']
    %8 = vsyncpa [#allocation3], 0
    // Predicated region
    $region2: #{_noise_forward.3} parent=1 // pred_check
      _
    $region3: #{_noise_forward.3} parent=1 // pred_check_branch
      %10 = sbr.rel (0) target = $region5
    $region4: #{_noise_forward.3} parent=1 // pred_region
      _
    $region5: #{_noise_forward.3} parent=1 // pred_fallthru
      _
    // Predicated region
    $region6: #{_noise_forward.3} parent=1 // pred_check
      _
    $region7: #{_noise_forward.3} parent=1 // pred_check_branch
      %12 = sbr.rel (0) target = $region9
    $region8: #{_noise_forward.3} parent=1 // pred_region
      _
    $region9: #{_noise_forward.3} parent=1 // pred_fallthru
      _
    // Predicated region
    $region10: #{_noise_forward.3} parent=1 // pred_check
      _
    $region11: #{_noise_forward.3} parent=1 // pred_check_branch
      %14 = sbr.rel (0) target = $region13
    $region12: #{_noise_forward.3} parent=1 // pred_region
      _
    $region13: #{_noise_forward.3} parent=1 // pred_fallthru
      _
    %v16 = vld [vmem:[%s0] sm:$0xf]
    %v17 = vld [vmem:[%s1] sm:$0xf]
    %v18 = vld [vmem:[%s1 + $0x4] sm:$0xf]
    %v19 = vld [vmem:[%s1 + $0x8] sm:$0xf]
    %v20 = vld [vmem:[%s1 + $0xc] sm:$0xf]
    %v21 = vld [vmem:[%s1 + $0x10] sm:$0xf]
    %v22 = vld [vmem:[%s1 + $0x14] sm:$0xf]
    %v23 = vld [vmem:[%s1 + $0x18] sm:$0xf]
    %v24 = vld [vmem:[%s1 + $0x1c] sm:$0xf]
    %v25 = vld [vmem:[%s1 + $0x20] sm:$0xf]
    %v26 = vld [vmem:[%s1 + $0x24] sm:$0xf]
    %v27 = vld [vmem:[%s1 + $0x28] sm:$0xf]
    %v28 = vld [vmem:[%s1 + $0x2c] sm:$0xf]
    %v29 = vld [vmem:[%s1 + $0x30] sm:$0xf]
    %v30 = vld [vmem:[%s1 + $0x34] sm:$0xf]
    %v31 = vld [vmem:[%s1 + $0x38] sm:$0xf]
    %v32 = vld [vmem:[%s1 + $0x3c] sm:$0xf]
    %v33 = vld [vmem:[%s2] sm:$0x1]
    %v35 = vlaneseq
    %v36 = vshrl.u32 %v35, 7
    %v37 = vsub.s32 0, %v36
    %v38 = vrot.slane %v33, %v37
    %v56 = vunpack.c.l.b16 %v17
    %v57 = vunpack.c.l.b16 %v18
    %v58 = vunpack.c.l.b16 %v19
    %v59 = vunpack.c.l.b16 %v20
    %v60 = vunpack.c.l.b16 %v21
    %v61 = vunpack.c.l.b16 %v22
    %v62 = vunpack.c.l.b16 %v23
    %v63 = vunpack.c.l.b16 %v24
    %v64 = vunpack.c.l.b16 %v25
    %v65 = vunpack.c.l.b16 %v26
    %v66 = vunpack.c.l.b16 %v27
    %v67 = vunpack.c.l.b16 %v28
    %v68 = vunpack.c.l.b16 %v29
    %v69 = vunpack.c.l.b16 %v30
    %v70 = vunpack.c.l.b16 %v31
    %v71 = vunpack.c.l.b16 %v32
    %v72 = vpack.c.b16 %v57, %v56
    %v73 = vpack.c.b16 %v59, %v58
    %v74 = vpack.c.b16 %v61, %v60
    %v75 = vpack.c.b16 %v63, %v62
    %v76 = vpack.c.b16 %v65, %v64
    %v77 = vpack.c.b16 %v67, %v66
    %v78 = vpack.c.b16 %v69, %v68
    %v79 = vpack.c.b16 %v71, %v70
    %88 = vmatprep.subr.bf16.mxu0 0
    %89 = vmatpush1.bf16.msra.mxu0 %v72
    %90 = vmatprep.subr.bf16.mxu0 0
    %91 = vmatpush1.bf16.msra.mxu0 %v73
    %92 = vmatprep.subr.bf16.mxu0 0
    %93 = vmatpush1.bf16.msra.mxu0 %v74
    %94 = vmatprep.subr.bf16.mxu0 0
    %95 = vmatpush1.bf16.msra.mxu0 %v75
    %96 = vmatprep.subr.bf16.mxu0 0
    %97 = vmatpush1.bf16.msra.mxu0 %v76
    %98 = vmatprep.subr.bf16.mxu0 0
    %99 = vmatpush1.bf16.msra.mxu0 %v77
    %100 = vmatprep.subr.bf16.mxu0 0
    %101 = vmatpush1.bf16.msra.mxu0 %v78
    %102 = vmatprep.subr.bf16.mxu0 0
    %103 = vmatpush1.bf16.msra.mxu0 %v79
    %104 = vmatprep.subr.bf16.mxu0 0
    %105 = vmatpush1.bf16.msra.mxu0 0
    %106 = vmatprep.subr.bf16.mxu0 0
    %107 = vmatpush1.bf16.msra.mxu0 0
    %108 = vmatprep.subr.bf16.mxu0 0
    %109 = vmatpush1.bf16.msra.mxu0 0
    %110 = vmatprep.subr.bf16.mxu0 0
    %111 = vmatpush1.bf16.msra.mxu0 0
    %112 = vmatprep.subr.bf16.mxu0 0
    %113 = vmatpush1.bf16.msra.mxu0 0
    %114 = vmatprep.subr.bf16.mxu0 0
    %115 = vmatpush1.bf16.msra.mxu0 0
    %116 = vmatprep.subr.bf16.mxu0 0
    %117 = vmatpush1.bf16.msra.mxu0 0
    %118 = vmatprep.subr.bf16.mxu0 0
    %119 = vmatpush1.bf16.msra.mxu0 0
    %120 = vmatprep.mubr.bf16.mxu0 0
    %121 = vmatmul.mubr.bf16.gmra.mrb[0].mxu0 %v16
    %v122 = vpop.f32.mrb[0].mxu0
    %v123 = vadd.f32 %v38, %v122
    %v124 = vpop.f32.mrb[0].mxu0
    %v125 = vpop.f32.mrb[0].mxu0
    %v126 = vpop.f32.mrb[0].mxu0
    %127 = vdwg.mxu0
    %128 = vst [vmem:[#allocation2] sm:$0xff] %v123
    // Predicated region
    $region14: #{_noise_forward.3} parent=1 // pred_check
      _
    $region15: #{_noise_forward.3} parent=1 // pred_check_branch
      %130 = sbr.rel (0) target = $region17
    $region16: #{_noise_forward.3} parent=1 // pred_region
      %s132 = ssub.s32 128, 128
      %133 = vsyncadd [#allocation3], %s132
      %s135 = sshll.u32 [#allocation2], 4
      %s136 = int_to_ptr.vmem [resolvable:$true] %s135
      %138 = dma.vmem_to_hbm [thread:$0]  %s136, 128, %s3, [#allocation3]
    $region17: #{_noise_forward.3} parent=1 // pred_fallthru
      _
    // Predicated region
    $region18: #{_noise_forward.3} parent=1 // pred_check
      _
    $region19: #{_noise_forward.3} parent=1 // pred_check_branch
      %140 = sbr.rel (0) target = $region21
    $region20: #{_noise_forward.3} parent=1 // pred_region
      %141 = dma.done [#allocation3], 128
    $region21: #{_noise_forward.3} parent=1 // pred_fallthru
      _
    %142 = vsyncpa [#allocation3], 1

</llo_original>
